<compile_context>
chip_gen: v7x
topology: tpu7x:2x2x1
jax: 0.10.0
libtpu: 0.0.40
codegen_flags: <defaults>
</compile_context>

<pallas_src>
import functools
import math

import jax
import jax.numpy as jnp
import numpy as np
from jax.experimental import pallas as pl
from jax.experimental.pallas import tpu as pltpu


def _round_up(x, m):
    return (x + m - 1) // m * m


# -----------------------------------------------------------------------------
# Kernel 1: node projection  h = inp @ W,  f1 = h . a1,  f2 = h . a2
# -----------------------------------------------------------------------------
def gat_project_kernel(inp_ref, w_ref, a1_ref, a2_ref, h_ref, f1_ref, f2_ref,
                       *, denom_col):
    # bf16 operands, f32 accumulation on the MXU.
    h = jnp.dot(inp_ref[...], w_ref[...], preferred_element_type=jnp.float32)
    # Plant an all-ones column in a padded feature lane: the attention kernel
    # reads its softmax denominator from this MXU output column for free.
    col = jax.lax.broadcasted_iota(jnp.int32, h.shape, 1)
    h = jnp.where(col == denom_col, 1.0, h)
    # Lane reductions (VPU/XLU) instead of 1-wide MXU matvecs.  a1/a2 are zero
    # in the padded lanes, so the ones column does not leak into f1/f2.
    f1_ref[...] = jnp.sum(h * a1_ref[...], axis=1, keepdims=True)
    f2_ref[...] = jnp.sum(h * a2_ref[...], axis=1, keepdims=True)
    h_ref[...] = h.astype(h_ref.dtype)


# -----------------------------------------------------------------------------
# Kernel 2: online-softmax attention + aggregation over (query blk, key blk)
# -----------------------------------------------------------------------------
def gat_attention_kernel(f1_ref, f2_ref, adj_ref, h_ref, out_ref,
                         m_ref, acc_ref, *, alpha, concat, denom_col):
    k = pl.program_id(1)

    @pl.when(k == 0)
    def _():
        m_ref[...] = jnp.full_like(m_ref, -jnp.inf)
        acc_ref[...] = jnp.zeros_like(acc_ref)

    # e[i, j] = leakyrelu(f1[i] + f2[j]); mask by int8 adjacency -> -1e12.
    e = f1_ref[...] + f2_ref[...]                         # (tq, tk) f32
    e = jnp.where(e > 0, e, alpha * e)
    att = jnp.where(adj_ref[...] > 0, e, -1.0e12)

    # Online (streaming) softmax over the key axis.  Running max and the
    # accumulator stay in f32; the exp itself runs in bf16 on the EUP since
    # its result feeds the bf16 MXU matmul anyway (max-subtraction in f32
    # avoids bf16 cancellation).
    m_prev = m_ref[...]
    m_new = jnp.maximum(m_prev, jnp.max(att, axis=1, keepdims=True))
    p = jnp.exp((att - m_new).astype(jnp.bfloat16))       # (tq, tk) bf16
    scale = jnp.exp(m_prev - m_new)                       # (tq, 1)  f32

    # h's `denom_col` column is all ones, so acc[:, denom_col] carries the
    # running softmax denominator (MXU row-sum, no second XLU reduction).
    acc_ref[...] = acc_ref[...] * scale + jnp.dot(
        p, h_ref[...], preferred_element_type=jnp.float32)
    m_ref[...] = m_new

    @pl.when(k == pl.num_programs(1) - 1)
    def _():
        acc = acc_ref[...]
        denom = acc[:, denom_col:denom_col + 1]            # (tq, 1) f32
        hp = acc * pl.reciprocal(denom, approx=True)
        if concat:
            # ELU (alpha=1.0, PyTorch default)
            hp = jnp.where(hp > 0, hp, jnp.expm1(hp))
        out_ref[...] = hp.astype(out_ref.dtype)


# -----------------------------------------------------------------------------
# Adjacency packing (hoistable: multi-head / multi-layer callers pay this once)
# -----------------------------------------------------------------------------
def _pack_adjacency(adj, n_pad):
    """(N, N) float/bool adjacency -> zero-padded (n_pad, n_pad) int8 mask."""
    n = adj.shape[0]
    return jnp.zeros((n_pad, n_pad), jnp.int8).at[:n, :n].set(
        (adj > 0).astype(jnp.int8))


# -----------------------------------------------------------------------------
# Wrapper
# -----------------------------------------------------------------------------
def gat_layer(inp, adj, W, a, *, alpha=0.2, concat=True,
              block_q=256, block_k=1024, adj_packed=None):
    N, in_features = inp.shape
    out_features = W.shape[1]

    # ---- tile / padding geometry --------------------------------------------
    block_q = _round_up(block_q, 32)
    block_k = _round_up(block_k, 128)
    tk = min(block_k, _round_up(N, 128))     # key tile: lane axis of adj/f2
    n_pad = _round_up(N, tk)                 # tk | n_pad  and  128 | n_pad
    tp = math.gcd(block_q, n_pad)            # projection row tile
    tq = tp                                  # query tile: multiple of 32,
                                             # matches the int8 (32,128) tile
    if n_pad // tq < 2 and tq >= 64:         # give v7x's 2 TensorCores at
        tq //= 2                             # least two row blocks to split
    # Lane-dense feature axis + >=1 spare padded column for the all-ones
    # softmax-denominator trick (works even when out_features % 128 == 0).
    f_pad = _round_up(out_features + 1, 128)
    denom_col = out_features

    # ---- operand prep (plain XLA) -------------------------------------------
    inp_p = jnp.zeros((n_pad, in_features), jnp.bfloat16).at[:N, :].set(
        inp.astype(jnp.bfloat16))
    w_p = jnp.zeros((in_features, f_pad), jnp.bfloat16).at[:, :out_features].set(
        W.astype(jnp.bfloat16))
    a1 = jnp.zeros((1, f_pad), jnp.float32).at[0, :out_features].set(
        a[:out_features, 0].astype(jnp.float32))
    a2 = jnp.zeros((1, f_pad), jnp.float32).at[0, :out_features].set(
        a[out_features:, 0].astype(jnp.float32))
    if adj_packed is None:
        adj_packed = _pack_adjacency(adj, n_pad)
    else:
        assert adj_packed.shape == (n_pad, n_pad) and adj_packed.dtype == jnp.int8

    # Tiles bound VMEM to a few MiB independent of N; 32 MiB scoped limit is
    # safe on v5e/v6e/v7x (raise block_q/block_k + this limit on 128 MiB chips).
    vmem_limit = 32 * 1024 * 1024

    # ---- kernel 1: projection (h, f1, f2), row-tiled -------------------------
    h, f1, f2col = pl.pallas_call(
        functools.partial(gat_project_kernel, denom_col=denom_col),
        grid=(n_pad // tp,),
        in_specs=[
            pl.BlockSpec((tp, in_features), lambda i: (i, 0)),
            pl.BlockSpec((in_features, f_pad), lambda i: (0, 0)),   # resident
            pl.BlockSpec((1, f_pad), lambda i: (0, 0)),             # resident
            pl.BlockSpec((1, f_pad), lambda i: (0, 0)),             # resident
        ],
        out_specs=(
            pl.BlockSpec((tp, f_pad), lambda i: (i, 0)),
            pl.BlockSpec((tp, 1), lambda i: (i, 0)),
            pl.BlockSpec((tp, 1), lambda i: (i, 0)),
        ),
        out_shape=(
            jax.ShapeDtypeStruct((n_pad, f_pad), jnp.bfloat16),
            jax.ShapeDtypeStruct((n_pad, 1), jnp.float32),
            jax.ShapeDtypeStruct((n_pad, 1), jnp.float32),
        ),
        compiler_params=pltpu.CompilerParams(
            dimension_semantics=("parallel",),
            vmem_limit_bytes=vmem_limit),
    )(inp_p, w_p, a1, a2)

    # (n_pad, 1) -> (1, n_pad): same element order, tiny O(N) XLA reshape.
    f2_row = f2col.reshape(1, n_pad)

    # ---- kernel 2: online-softmax attention ----------------------------------
    n_i, n_k = n_pad // tq, n_pad // tk
    cost = pl.CostEstimate(
        flops=2 * n_pad * n_pad * f_pad + 10 * n_pad * n_pad,
        transcendentals=n_pad * n_pad + n_pad * n_k,
        bytes_accessed=(n_pad * n_pad                     # adj (int8), once
                        + n_i * n_pad * f_pad * 2         # h (bf16), per row blk
                        + n_i * n_pad * 4 + n_pad * 4     # f2 / f1
                        + n_pad * f_pad * 2),             # out (bf16)
    )

    out_pad = pl.pallas_call(
        functools.partial(gat_attention_kernel, alpha=alpha, concat=concat,
                          denom_col=denom_col),
        grid=(n_i, n_k),
        in_specs=[
            pl.BlockSpec((tq, 1), lambda i, k: (i, 0)),       # f1 column block
            pl.BlockSpec((1, tk), lambda i, k: (0, k)),       # f2 row block
            pl.BlockSpec((tq, tk), lambda i, k: (i, k)),      # adj tile (int8)
            pl.BlockSpec((tk, f_pad), lambda i, k: (k, 0)),   # h key tile (bf16)
        ],
        out_specs=pl.BlockSpec((tq, f_pad), lambda i, k: (i, 0)),
        out_shape=jax.ShapeDtypeStruct((n_pad, f_pad), jnp.bfloat16),
        scratch_shapes=[
            pltpu.VMEM((tq, 1), jnp.float32),       # running max m
            pltpu.VMEM((tq, f_pad), jnp.float32),   # f32 accumulator (+ denom col)
        ],
        compiler_params=pltpu.CompilerParams(
            dimension_semantics=("parallel", "arbitrary"),
            vmem_limit_bytes=vmem_limit),
        cost_estimate=cost,
    )(f1, f2_row, adj_packed, h)

    return out_pad[:N, :out_features].astype(jnp.float32)


# -----------------------------------------------------------------------------
# Reference (pure JAX, mirrors the PyTorch forward with training=False)
# -----------------------------------------------------------------------------
def gat_reference(inp, adj, W, a, *, alpha, concat):
    out_features = W.shape[1]
    h = inp @ W
    e = h @ a[:out_features] + (h @ a[out_features:]).T
    e = jnp.where(e > 0, e, alpha * e)
    att = jnp.where(adj > 0, e, -1.0e12)
    att = jax.nn.softmax(att, axis=1)
    hp = att @ h
    return jnp.where(hp > 0, hp, jnp.expm1(hp)) if concat else hp


def xavier_uniform(key, shape, gain):
    fan_in, fan_out = shape[0], shape[1]
    bound = gain * math.sqrt(6.0 / (fan_in + fan_out))
    return jax.random.uniform(key, shape, jnp.float32, minval=-bound, maxval=bound)


if __name__ == "__main__":
    # Small GAT: N=8 nodes, in_features=16, out_features=32
    N, in_features, out_features = 8, 16, 32
    alpha = 0.2

    key = jax.random.PRNGKey(0)
    k_w, k_a, k_x, k_adj = jax.random.split(key, 4)

    # Deterministic parameter init matching nn.init.xavier_uniform_(gain=1.414)
    W = xavier_uniform(k_w, (in_features, out_features), gain=1.414)
    a = xavier_uniform(k_a, (2 * out_features, 1), gain=1.414)

    # Inputs
    inp = jax.random.normal(k_x, (N, in_features), jnp.float32)
    adj = jax.random.bernoulli(k_adj, 0.5, (N, N)).astype(jnp.float32)
    adj = jnp.maximum(adj, jnp.eye(N, dtype=jnp.float32))  # self-loops

    out = gat_layer(inp, adj, W, a, alpha=alpha, concat=True)
    jax.block_until_ready(out)
    assert out.shape == (N, out_features)

    # Loose tolerance: kernel uses bf16 MXU operands, bf16 exp, bf16 output and
    # an approx reciprocal (documented deviation from the f32 PyTorch reference).
    ref = gat_reference(inp, adj, W, a, alpha=alpha, concat=True)
    assert np.allclose(np.asarray(out), np.asarray(ref), rtol=1e-1, atol=1e-1)
    print("KERNEL_OK")
</pallas_src>

<mosaic_0001>
module attributes {stable_mosaic.version = 11 : i64} {
  func.func @gat_project_kernel(%arg0: i32, %arg1: memref<128x16xbf16, #tpu.memory_space<vmem>>, %arg2: memref<16x128xbf16, #tpu.memory_space<vmem>>, %arg3: memref<1x128xf32, #tpu.memory_space<vmem>>, %arg4: memref<1x128xf32, #tpu.memory_space<vmem>>, %arg5: memref<128x128xbf16, #tpu.memory_space<vmem>>, %arg6: memref<128x1xf32, #tpu.memory_space<vmem>>, %arg7: memref<128x1xf32, #tpu.memory_space<vmem>>) attributes {dimension_semantics = [#tpu.dimension_semantics<parallel>], iteration_bounds = array<i64: 1>, scalar_prefetch = 0 : i64, scratch_operands = 0 : i64, tpu.core_type = #tpu.core_type<tc>, window_params = [{transform_indices = @transform_0, window_bounds = array<i64: 128, 16>}, {pipeline_mode = #tpu.pipeline_mode<synchronous>, transform_indices = @transform_1, window_bounds = array<i64: 16, 128>}, {pipeline_mode = #tpu.pipeline_mode<synchronous>, transform_indices = @transform_2, window_bounds = array<i64: 1, 128>}, {pipeline_mode = #tpu.pipeline_mode<synchronous>, transform_indices = @transform_3, window_bounds = array<i64: 1, 128>}, {transform_indices = @transform_4, window_bounds = array<i64: 128, 128>}, {transform_indices = @transform_5, window_bounds = array<i64: 128, 1>}, {transform_indices = @transform_6, window_bounds = array<i64: 128, 1>}]} {
    %c0 = arith.constant 0 : index
    %c0_0 = arith.constant 0 : index
    %0 = vector.load %arg1[%c0, %c0_0] : memref<128x16xbf16, #tpu.memory_space<vmem>>, vector<128x16xbf16>
    %c0_1 = arith.constant 0 : index
    %c0_2 = arith.constant 0 : index
    %1 = vector.load %arg2[%c0_1, %c0_2] : memref<16x128xbf16, #tpu.memory_space<vmem>>, vector<16x128xbf16>
    %cst = arith.constant dense<0.000000e+00> : vector<128x128xf32>
    %2 = tpu.matmul %0, %1, %cst {dimension_numbers = #tpu.dot_dimension_numbers<[1], [0], [0], [1], [0, 0, 1, 1], [], []>} : vector<128x16xbf16>, vector<16x128xbf16>, vector<128x128xf32> -> vector<128x128xf32>
    %3 = tpu.iota {dimensions = array<i32: 1>} : vector<128x128xi32>
    %c32_i32 = arith.constant 32 : i32
    %4 = vector.broadcast %c32_i32 : i32 to vector<128x128xi32>
    %5 = arith.cmpi eq, %3, %4 : vector<128x128xi32>
    %cst_3 = arith.constant 1.000000e+00 : f32
    %6 = vector.broadcast %cst_3 : f32 to vector<128x128xf32>
    %7 = arith.select %5, %6, %2 : vector<128x128xi1>, vector<128x128xf32>
    %c0_4 = arith.constant 0 : index
    %c0_5 = arith.constant 0 : index
    %8 = vector.load %arg3[%c0_4, %c0_5] : memref<1x128xf32, #tpu.memory_space<vmem>>, vector<1x128xf32>
    %9 = vector.broadcast %8 : vector<1x128xf32> to vector<128x128xf32>
    %10 = arith.mulf %7, %9 : vector<128x128xf32>
    %cst_6 = arith.constant dense<0.000000e+00> : vector<128xf32>
    %11 = vector.multi_reduction <add>, %10, %cst_6 [1] : vector<128x128xf32> to vector<128xf32>
    %12 = vector.shape_cast %11 : vector<128xf32> to vector<128x1xf32>
    %c0_7 = arith.constant 0 : index
    %c0_8 = arith.constant 0 : index
    %13 = vector.load %arg6[%c0_7, %c0_8] : memref<128x1xf32, #tpu.memory_space<vmem>>, vector<128x1xf32>
    tpu.vector_store %arg6[%c0_7, %c0_8], %12 {strides = array<i32>} : memref<128x1xf32, #tpu.memory_space<vmem>>, vector<128x1xf32>,
    %c0_9 = arith.constant 0 : index
    %c0_10 = arith.constant 0 : index
    %14 = vector.load %arg4[%c0_9, %c0_10] : memref<1x128xf32, #tpu.memory_space<vmem>>, vector<1x128xf32>
    %15 = vector.broadcast %14 : vector<1x128xf32> to vector<128x128xf32>
    %16 = arith.mulf %7, %15 : vector<128x128xf32>
    %cst_11 = arith.constant dense<0.000000e+00> : vector<128xf32>
    %17 = vector.multi_reduction <add>, %16, %cst_11 [1] : vector<128x128xf32> to vector<128xf32>
    %18 = vector.shape_cast %17 : vector<128xf32> to vector<128x1xf32>
    %c0_12 = arith.constant 0 : index
    %c0_13 = arith.constant 0 : index
    %19 = vector.load %arg7[%c0_12, %c0_13] : memref<128x1xf32, #tpu.memory_space<vmem>>, vector<128x1xf32>
    tpu.vector_store %arg7[%c0_12, %c0_13], %18 {strides = array<i32>} : memref<128x1xf32, #tpu.memory_space<vmem>>, vector<128x1xf32>,
    %20 = arith.truncf %7 : vector<128x128xf32> to vector<128x128xbf16>
    %c0_14 = arith.constant 0 : index
    %c0_15 = arith.constant 0 : index
    %21 = vector.load %arg5[%c0_14, %c0_15] : memref<128x128xbf16, #tpu.memory_space<vmem>>, vector<128x128xbf16>
    tpu.vector_store %arg5[%c0_14, %c0_15], %20 {strides = array<i32>} : memref<128x128xbf16, #tpu.memory_space<vmem>>, vector<128x128xbf16>,
    return
  }
  func.func @transform_0(%arg0: i32) -> (i32, i32) {
    %c0_i32 = arith.constant 0 : i32
    %c0_i32_0 = arith.constant 0 : i32
    return %arg0, %c0_i32 : i32, i32
  }
  func.func @transform_1(%arg0: i32) -> (i32, i32) {
    %c0_i32 = arith.constant 0 : i32
    %c0_i32_0 = arith.constant 0 : i32
    %c0_i32_1 = arith.constant 0 : i32
    return %c0_i32, %c0_i32_0 : i32, i32
  }
  func.func @transform_2(%arg0: i32) -> (i32, i32) {
    %c0_i32 = arith.constant 0 : i32
    %c0_i32_0 = arith.constant 0 : i32
    %c0_i32_1 = arith.constant 0 : i32
    return %c0_i32, %c0_i32_0 : i32, i32
  }
  func.func @transform_3(%arg0: i32) -> (i32, i32) {
    %c0_i32 = arith.constant 0 : i32
    %c0_i32_0 = arith.constant 0 : i32
    %c0_i32_1 = arith.constant 0 : i32
    return %c0_i32, %c0_i32_0 : i32, i32
  }
  func.func @transform_4(%arg0: i32) -> (i32, i32) {
    %c0_i32 = arith.constant 0 : i32
    %c0_i32_0 = arith.constant 0 : i32
    return %arg0, %c0_i32 : i32, i32
  }
  func.func @transform_5(%arg0: i32) -> (i32, i32) {
    %c0_i32 = arith.constant 0 : i32
    %c0_i32_0 = arith.constant 0 : i32
    return %arg0, %c0_i32 : i32, i32
  }
  func.func @transform_6(%arg0: i32) -> (i32, i32) {
    %c0_i32 = arith.constant 0 : i32
    %c0_i32_0 = arith.constant 0 : i32
    return %arg0, %c0_i32 : i32, i32
  }
}

</mosaic_0001>

<llo_original>
// kernel: tpu_custom_call.1
$region0: #{tpu_custom_call.1}
  #allocation0 [shape = 'u32[]', space=smem, size = 0x4, offset = 0x4, fixed_abs, tag = 'smem constant byte address 0x4 - core index']
  #allocation1 [shape = 'u32[144,128]{1,0:T(1,128)}', space=vmem, size = 0x12000, scoped, tag = 'internal scratch']
  %s0 = inlined_call_operand.vmem [shape: bf16[128,16], index: 0, kind: input, shape index: {}]
  %s1 = inlined_call_operand.vmem [shape: bf16[16,128], index: 1, kind: input, shape index: {}]
  %s2 = inlined_call_operand.vmem [shape: f32[1,128], index: 2, kind: input, shape index: {}]
  %s3 = inlined_call_operand.vmem [shape: f32[1,128], index: 3, kind: input, shape index: {}]
  %s4 = inlined_call_operand.hbm [shape: bf16[128,128], index: 4, kind: output, shape index: {0}]
  %s5 = inlined_call_operand.vmem [shape: f32[128,1], index: 5, kind: output, shape index: {1}]
  %s6 = inlined_call_operand.vmem [shape: f32[128,1], index: 6, kind: output, shape index: {2}]
  %7 = xla_tuple %s4, %s5, %s6
  %s8 = sld [smem:[#allocation0]]
  $region42: #{tpu_custom_call.1} parent=0
    _
  %s10 = ssub.s32 1, %s8
  %s11 = scalar_select 0, %s10, %s8
  $region1: #{tpu_custom_call.1} parent=0
    #allocation2 [shape = 'u8[32768]{0}', space=vmem, size = 0x8000, scoped, tag = 'output window, operand 0, single buffered']
    #allocation3 [shape = 's32[1]{0}', space=sflag, size = 0x4, scoped, tag = 'scoped memory for tpu_custom_call.1']
    %12 = vsyncpa [#allocation3], 0
    // Predicated region
    $region2: #{tpu_custom_call.1} parent=1 // pred_check
      _
    $region3: #{tpu_custom_call.1} parent=1 // pred_check_branch
      %14 = sbr.rel (0) target = $region5
    $region4: #{tpu_custom_call.1} parent=1 // pred_region
      _
    $region5: #{tpu_custom_call.1} parent=1 // pred_fallthru
      _
    // Predicated region
    $region6: #{tpu_custom_call.1} parent=1 // pred_check
      _
    $region7: #{tpu_custom_call.1} parent=1 // pred_check_branch
      %16 = sbr.rel (0) target = $region9
    $region8: #{tpu_custom_call.1} parent=1 // pred_region
      _
    $region9: #{tpu_custom_call.1} parent=1 // pred_fallthru
      _
    // Predicated region
    $region10: #{tpu_custom_call.1} parent=1 // pred_check
      _
    $region11: #{tpu_custom_call.1} parent=1 // pred_check_branch
      %18 = sbr.rel (0) target = $region13
    $region12: #{tpu_custom_call.1} parent=1 // pred_region
      _
    $region13: #{tpu_custom_call.1} parent=1 // pred_fallthru
      _
    // Predicated region
    $region14: #{tpu_custom_call.1} parent=1 // pred_check
      _
    $region15: #{tpu_custom_call.1} parent=1 // pred_check_branch
      %20 = sbr.rel (0) target = $region17
    $region16: #{tpu_custom_call.1} parent=1 // pred_region
      _
    $region17: #{tpu_custom_call.1} parent=1 // pred_fallthru
      _
    %v22 = vld [vmem:[%s0] sm:$0xf]
    %v23 = vld [vmem:[%s0 + $0x4] sm:$0xf]
    %v24 = vld [vmem:[%s0 + $0x8] sm:$0xf]
    %v25 = vld [vmem:[%s0 + $0xc] sm:$0xf]
    %v26 = vld [vmem:[%s0 + $0x10] sm:$0xf]
    %v27 = vld [vmem:[%s0 + $0x14] sm:$0xf]
    %v28 = vld [vmem:[%s0 + $0x18] sm:$0xf]
    %v29 = vld [vmem:[%s0 + $0x1c] sm:$0xf]
    %v30 = vld [vmem:[%s0 + $0x20] sm:$0xf]
    %v31 = vld [vmem:[%s0 + $0x24] sm:$0xf]
    %v32 = vld [vmem:[%s0 + $0x28] sm:$0xf]
    %v33 = vld [vmem:[%s0 + $0x2c] sm:$0xf]
    %v34 = vld [vmem:[%s0 + $0x30] sm:$0xf]
    %v35 = vld [vmem:[%s0 + $0x34] sm:$0xf]
    %v36 = vld [vmem:[%s0 + $0x38] sm:$0xf]
    %v37 = vld [vmem:[%s0 + $0x3c] sm:$0xf]
    %v38 = vld [vmem:[%s1] sm:$0xf]
    %v39 = vld [vmem:[%s1 + $0x4] sm:$0xf]
    %v56 = vunpack.c.l.b16 %v22
    %v57 = vunpack.c.l.b16 %v23
    %v58 = vunpack.c.l.b16 %v24
    %v59 = vunpack.c.l.b16 %v25
    %v60 = vunpack.c.l.b16 %v26
    %v61 = vunpack.c.l.b16 %v27
    %v62 = vunpack.c.l.b16 %v28
    %v63 = vunpack.c.l.b16 %v29
    %v64 = vunpack.c.l.b16 %v30
    %v65 = vunpack.c.l.b16 %v31
    %v66 = vunpack.c.l.b16 %v32
    %v67 = vunpack.c.l.b16 %v33
    %v68 = vunpack.c.l.b16 %v34
    %v69 = vunpack.c.l.b16 %v35
    %v70 = vunpack.c.l.b16 %v36
    %v71 = vunpack.c.l.b16 %v37
    %v72 = vpack.c.b16 %v57, %v56
    %v73 = vpack.c.b16 %v59, %v58
    %v74 = vpack.c.b16 %v61, %v60
    %v75 = vpack.c.b16 %v63, %v62
    %v76 = vpack.c.b16 %v65, %v64
    %v77 = vpack.c.b16 %v67, %v66
    %v78 = vpack.c.b16 %v69, %v68
    %v79 = vpack.c.b16 %v71, %v70
    %v82 = vunpack.c.l.b16 %v38
    %v83 = vunpack.c.l.b16 %v39
    %v84 = vpack.c.b16 %v83, %v82
    %vm86 = vcmask 130048
    %v88 = vsel %vm86, %v72, 0
    %v91 = vsel %vm86, %v73, 0
    %v94 = vsel %vm86, %v74, 0
    %v97 = vsel %vm86, %v75, 0
    %v100 = vsel %vm86, %v76, 0
    %v103 = vsel %vm86, %v77, 0
    %v106 = vsel %vm86, %v78, 0
    %v109 = vsel %vm86, %v79, 0
    %111 = vmatprep.subr.bf16.mxu0 0
    %112 = vmatpush1.bf16.msra.mxu0 %v84
    %113 = vmatprep.subr.bf16.mxu0 0
    %114 = vmatpush1.bf16.msra.mxu0 0
    %115 = vmatprep.subr.bf16.mxu0 0
    %116 = vmatpush1.bf16.msra.mxu0 0
    %117 = vmatprep.subr.bf16.mxu0 0
    %118 = vmatpush1.bf16.msra.mxu0 0
    %119 = vmatprep.subr.bf16.mxu0 0
    %120 = vmatpush1.bf16.msra.mxu0 0
    %121 = vmatprep.subr.bf16.mxu0 0
    %122 = vmatpush1.bf16.msra.mxu0 0
    %123 = vmatprep.subr.bf16.mxu0 0
    %124 = vmatpush1.bf16.msra.mxu0 0
    %125 = vmatprep.subr.bf16.mxu0 0
    %126 = vmatpush1.bf16.msra.mxu0 0
    %127 = vmatprep.subr.bf16.mxu0 0
    %128 = vmatpush1.bf16.msra.mxu0 0
    %129 = vmatprep.subr.bf16.mxu0 0
    %130 = vmatpush1.bf16.msra.mxu0 0
    %131 = vmatprep.subr.bf16.mxu0 0
    %132 = vmatpush1.bf16.msra.mxu0 0
    %133 = vmatprep.subr.bf16.mxu0 0
    %134 = vmatpush1.bf16.msra.mxu0 0
    %135 = vmatprep.subr.bf16.mxu0 0
    %136 = vmatpush1.bf16.msra.mxu0 0
    %137 = vmatprep.subr.bf16.mxu0 0
    %138 = vmatpush1.bf16.msra.mxu0 0
    %139 = vmatprep.subr.bf16.mxu0 0
    %140 = vmatpush1.bf16.msra.mxu0 0
    %141 = vmatprep.subr.bf16.mxu0 0
    %142 = vmatpush1.bf16.msra.mxu0 0
    %143 = vmatprep.mubr.bf16.mxu0 0
    %144 = vmatmul.mubr.bf16.gmra.mrb[0].mxu0 %v88
    %v145 = vpop.f32.mrb[0].mxu0
    %v146 = vadd.f32 0.0, %v145
    %v147 = vpop.f32.mrb[0].mxu0
    %v148 = vpop.f32.mrb[0].mxu0
    %v149 = vadd.f32 0.0, %v148
    %v150 = vpop.f32.mrb[0].mxu0
    %151 = vmatprep.mubr.bf16.mxu0 0
    %152 = vmatmul.mubr.bf16.gmra.mrb[0].mxu0 %v91
    %v153 = vpop.f32.mrb[0].mxu0
    %v154 = vadd.f32 0.0, %v153
    %v155 = vpop.f32.mrb[0].mxu0
    %v156 = vpop.f32.mrb[0].mxu0
    %v157 = vadd.f32 0.0, %v156
    %v158 = vpop.f32.mrb[0].mxu0
    %159 = vmatprep.mubr.bf16.mxu0 0
    %160 = vmatmul.mubr.bf16.gmra.mrb[0].mxu0 %v94
    %v161 = vpop.f32.mrb[0].mxu0
    %v162 = vadd.f32 0.0, %v161
    %v163 = vpop.f32.mrb[0].mxu0
    %v164 = vpop.f32.mrb[0].mxu0
    %v165 = vadd.f32 0.0, %v164
    %v166 = vpop.f32.mrb[0].mxu0
    %167 = vmatprep.mubr.bf16.mxu0 0
    %168 = vmatmul.mubr.bf16.gmra.mrb[0].mxu0 %v97
    %v169 = vpop.f32.mrb[0].mxu0
    %v170 = vadd.f32 0.0, %v169
    %v171 = vpop.f32.mrb[0].mxu0
    %v172 = vpop.f32.mrb[0].mxu0
    %v173 = vadd.f32 0.0, %v172
    %v174 = vpop.f32.mrb[0].mxu0
    %175 = vmatprep.mubr.bf16.mxu0 0
    %176 = vmatmul.mubr.bf16.gmra.mrb[0].mxu0 %v100
    %v177 = vpop.f32.mrb[0].mxu0
    %v178 = vadd.f32 0.0, %v177
    %v179 = vpop.f32.mrb[0].mxu0
    %v180 = vpop.f32.mrb[0].mxu0
    %v181 = vadd.f32 0.0, %v180
    %v182 = vpop.f32.mrb[0].mxu0
    %183 = vmatprep.mubr.bf16.mxu0 0
    %184 = vmatmul.mubr.bf16.gmra.mrb[0].mxu0 %v103
    %v185 = vpop.f32.mrb[0].mxu0
    %v186 = vadd.f32 0.0, %v185
    %v187 = vpop.f32.mrb[0].mxu0
    %v188 = vpop.f32.mrb[0].mxu0
    %v189 = vadd.f32 0.0, %v188
    %v190 = vpop.f32.mrb[0].mxu0
    %191 = vmatprep.mubr.bf16.mxu0 0
    %192 = vmatmul.mubr.bf16.gmra.mrb[0].mxu0 %v106
    %v193 = vpop.f32.mrb[0].mxu0
    %v194 = vadd.f32 0.0, %v193
    %v195 = vpop.f32.mrb[0].mxu0
    %v196 = vpop.f32.mrb[0].mxu0
    %v197 = vadd.f32 0.0, %v196
    %v198 = vpop.f32.mrb[0].mxu0
    %199 = vmatprep.mubr.bf16.mxu0 0
    %200 = vmatmul.mubr.bf16.gmra.mrb[0].mxu0 %v109
    %v201 = vpop.f32.mrb[0].mxu0
    %v202 = vadd.f32 0.0, %v201
    %v203 = vpop.f32.mrb[0].mxu0
    %v204 = vpop.f32.mrb[0].mxu0
    %v205 = vadd.f32 0.0, %v204
    %v206 = vpop.f32.mrb[0].mxu0
    %207 = vdwg.mxu0
    %v208 = vlaneseq
    %v209 = vand.u32 %v208, 127
    %vm210 = vcmp.eq.s32.totalorder %v209, 32
    %v211 = vsel %vm210, 1.0, %v146
    %v212 = vsel %vm210, 1.0, %v149
    %v213 = vsel %vm210, 1.0, %v154
    %v214 = vsel %vm210, 1.0, %v157
    %v215 = vsel %vm210, 1.0, %v162
    %v216 = vsel %vm210, 1.0, %v165
    %v217 = vsel %vm210, 1.0, %v170
    %v218 = vsel %vm210, 1.0, %v173
    %v219 = vsel %vm210, 1.0, %v178
    %v220 = vsel %vm210, 1.0, %v181
    %v221 = vsel %vm210, 1.0, %v186
    %v222 = vsel %vm210, 1.0, %v189
    %v223 = vsel %vm210, 1.0, %v194
    %v224 = vsel %vm210, 1.0, %v197
    %v225 = vsel %vm210, 1.0, %v202
    %v226 = vsel %vm210, 1.0, %v205
    %v227 = vld [vmem:[%s2] sm:$0x1]
    %v229 = vlaneseq
    %v230 = vshrl.u32 %v229, 7
    %v231 = vsub.s32 0, %v230
    %v232 = vrot.slane %v227, %v231
    %v234 = vmul.f32 %v211, %v232
    %v235 = vmul.f32 %v212, %v232
    %v236 = vmul.f32 %v213, %v232
    %v237 = vmul.f32 %v214, %v232
    %v238 = vmul.f32 %v215, %v232
    %v239 = vmul.f32 %v216, %v232
    %v240 = vmul.f32 %v217, %v232
    %v241 = vmul.f32 %v218, %v232
    %v242 = vmul.f32 %v219, %v232
    %v243 = vmul.f32 %v220, %v232
    %v244 = vmul.f32 %v221, %v232
    %v245 = vmul.f32 %v222, %v232
    %v246 = vmul.f32 %v223, %v232
    %v247 = vmul.f32 %v224, %v232
    %v248 = vmul.f32 %v225, %v232
    %v249 = vmul.f32 %v226, %v232
    %250 = vadd.xlane.f32.xlu0 %v234
    %v251 = vpop.xlane.xlu0 %250
    %252 = vadd.xlane.f32.xlu0 %v235
    %v253 = vpop.xlane.xlu0 %252
    %254 = vadd.xlane.f32.xlu0 %v236
    %v255 = vpop.xlane.xlu0 %254
    %256 = vadd.xlane.f32.xlu0 %v237
    %v257 = vpop.xlane.xlu0 %256
    %258 = vadd.xlane.f32.xlu0 %v238
    %v259 = vpop.xlane.xlu0 %258
    %260 = vadd.xlane.f32.xlu0 %v239
    %v261 = vpop.xlane.xlu0 %260
    %262 = vadd.xlane.f32.xlu0 %v240
    %v263 = vpop.xlane.xlu0 %262
    %264 = vadd.xlane.f32.xlu0 %v241
    %v265 = vpop.xlane.xlu0 %264
    %266 = vadd.xlane.f32.xlu0 %v242
    %v267 = vpop.xlane.xlu0 %266
    %268 = vadd.xlane.f32.xlu0 %v243
    %v269 = vpop.xlane.xlu0 %268
    %270 = vadd.xlane.f32.xlu0 %v244
    %v271 = vpop.xlane.xlu0 %270
    %272 = vadd.xlane.f32.xlu0 %v245
    %v273 = vpop.xlane.xlu0 %272
    %274 = vadd.xlane.f32.xlu0 %v246
    %v275 = vpop.xlane.xlu0 %274
    %276 = vadd.xlane.f32.xlu0 %v247
    %v277 = vpop.xlane.xlu0 %276
    %278 = vadd.xlane.f32.xlu0 %v248
    %v279 = vpop.xlane.xlu0 %278
    %280 = vadd.xlane.f32.xlu0 %v249
    %v281 = vpop.xlane.xlu0 %280
    %vm282 = vcmask 7168
    %283 = vst.msk [vmem:[%s5] sm:$0xff] %vm282, %v251
    %284 = vst.msk [vmem:[%s5 + $0x8] sm:$0xff] %vm282, %v253
    %285 = vst.msk [vmem:[%s5 + $0x10] sm:$0xff] %vm282, %v255
    %286 = vst.msk [vmem:[%s5 + $0x18] sm:$0xff] %vm282, %v257
    %287 = vst.msk [vmem:[%s5 + $0x20] sm:$0xff] %vm282, %v259
    %288 = vst.msk [vmem:[%s5 + $0x28] sm:$0xff] %vm282, %v261
    %289 = vst.msk [vmem:[%s5 + $0x30] sm:$0xff] %vm282, %v263
    %290 = vst.msk [vmem:[%s5 + $0x38] sm:$0xff] %vm282, %v265
    %291 = vst.msk [vmem:[%s5 + $0x40] sm:$0xff] %vm282, %v267
    %292 = vst.msk [vmem:[%s5 + $0x48] sm:$0xff] %vm282, %v269
    %293 = vst.msk [vmem:[%s5 + $0x50] sm:$0xff] %vm282, %v271
    %294 = vst.msk [vmem:[%s5 + $0x58] sm:$0xff] %vm282, %v273
    %295 = vst.msk [vmem:[%s5 + $0x60] sm:$0xff] %vm282, %v275
    %296 = vst.msk [vmem:[%s5 + $0x68] sm:$0xff] %vm282, %v277
    %297 = vst.msk [vmem:[%s5 + $0x70] sm:$0xff] %vm282, %v279
    %298 = vst.msk [vmem:[%s5 + $0x78] sm:$0xff] %vm282, %v281
    %v299 = vld [vmem:[%s3] sm:$0x1]
    %v301 = vlaneseq
    %v302 = vshrl.u32 %v301, 7
    %v303 = vsub.s32 0, %v302
    %v304 = vrot.slane %v299, %v303
    %v306 = vmul.f32 %v211, %v304
    %v307 = vmul.f32 %v212, %v304
    %v308 = vmul.f32 %v213, %v304
    %v309 = vmul.f32 %v214, %v304
    %v310 = vmul.f32 %v215, %v304
    %v311 = vmul.f32 %v216, %v304
    %v312 = vmul.f32 %v217, %v304
    %v313 = vmul.f32 %v218, %v304
    %v314 = vmul.f32 %v219, %v304
    %v315 = vmul.f32 %v220, %v304
    %v316 = vmul.f32 %v221, %v304
    %v317 = vmul.f32 %v222, %v304
    %v318 = vmul.f32 %v223, %v304
    %v319 = vmul.f32 %v224, %v304
    %v320 = vmul.f32 %v225, %v304
    %v321 = vmul.f32 %v226, %v304
    %322 = vadd.xlane.f32.xlu0 %v306
    %v323 = vpop.xlane.xlu0 %322
    %324 = vadd.xlane.f32.xlu0 %v307
    %v325 = vpop.xlane.xlu0 %324
    %326 = vadd.xlane.f32.xlu0 %v308
    %v327 = vpop.xlane.xlu0 %326
    %328 = vadd.xlane.f32.xlu0 %v309
    %v329 = vpop.xlane.xlu0 %328
    %330 = vadd.xlane.f32.xlu0 %v310
    %v331 = vpop.xlane.xlu0 %330
    %332 = vadd.xlane.f32.xlu0 %v311
    %v333 = vpop.xlane.xlu0 %332
    %334 = vadd.xlane.f32.xlu0 %v312
    %v335 = vpop.xlane.xlu0 %334
    %336 = vadd.xlane.f32.xlu0 %v313
    %v337 = vpop.xlane.xlu0 %336
    %338 = vadd.xlane.f32.xlu0 %v314
    %v339 = vpop.xlane.xlu0 %338
    %340 = vadd.xlane.f32.xlu0 %v315
    %v341 = vpop.xlane.xlu0 %340
    %342 = vadd.xlane.f32.xlu0 %v316
    %v343 = vpop.xlane.xlu0 %342
    %344 = vadd.xlane.f32.xlu0 %v317
    %v345 = vpop.xlane.xlu0 %344
    %346 = vadd.xlane.f32.xlu0 %v318
    %v347 = vpop.xlane.xlu0 %346
    %348 = vadd.xlane.f32.xlu0 %v319
    %v349 = vpop.xlane.xlu0 %348
    %350 = vadd.xlane.f32.xlu0 %v320
    %v351 = vpop.xlane.xlu0 %350
    %352 = vadd.xlane.f32.xlu0 %v321
    %v353 = vpop.xlane.xlu0 %352
    %354 = vst.msk [vmem:[%s6] sm:$0xff] %vm282, %v323
    %355 = vst.msk [vmem:[%s6 + $0x8] sm:$0xff] %vm282, %v325
    %356 = vst.msk [vmem:[%s6 + $0x10] sm:$0xff] %vm282, %v327
    %357 = vst.msk [vmem:[%s6 + $0x18] sm:$0xff] %vm282, %v329
    %358 = vst.msk [vmem:[%s6 + $0x20] sm:$0xff] %vm282, %v331
    %359 = vst.msk [vmem:[%s6 + $0x28] sm:$0xff] %vm282, %v333
    %360 = vst.msk [vmem:[%s6 + $0x30] sm:$0xff] %vm282, %v335
    %361 = vst.msk [vmem:[%s6 + $0x38] sm:$0xff] %vm282, %v337
    %362 = vst.msk [vmem:[%s6 + $0x40] sm:$0xff] %vm282, %v339
    %363 = vst.msk [vmem:[%s6 + $0x48] sm:$0xff] %vm282, %v341
    %364 = vst.msk [vmem:[%s6 + $0x50] sm:$0xff] %vm282, %v343
    %365 = vst.msk [vmem:[%s6 + $0x58] sm:$0xff] %vm282, %v345
    %366 = vst.msk [vmem:[%s6 + $0x60] sm:$0xff] %vm282, %v347
    %367 = vst.msk [vmem:[%s6 + $0x68] sm:$0xff] %vm282, %v349
    %368 = vst.msk [vmem:[%s6 + $0x70] sm:$0xff] %vm282, %v351
    %369 = vst.msk [vmem:[%s6 + $0x78] sm:$0xff] %vm282, %v353
    %v370 = vpack.c.bf16 %v212, %v211
    %v371 = vpack.c.bf16 %v214, %v213
    %v372 = vpack.c.bf16 %v216, %v215
    %v373 = vpack.c.bf16 %v218, %v217
    %v374 = vpack.c.bf16 %v220, %v219
    %v375 = vpack.c.bf16 %v222, %v221
    %v376 = vpack.c.bf16 %v224, %v223
    %v377 = vpack.c.bf16 %v226, %v225
    %v386 = vunpack.c.l.b16 %v370
    %v387 = vunpack.c.h.b16 %v370
    %v388 = vunpack.c.l.b16 %v371
    %v389 = vunpack.c.h.b16 %v371
    %v390 = vunpack.c.l.b16 %v372
    %v391 = vunpack.c.h.b16 %v372
    %v392 = vunpack.c.l.b16 %v373
    %v393 = vunpack.c.h.b16 %v373
    %v394 = vunpack.c.l.b16 %v374
    %v395 = vunpack.c.h.b16 %v374
    %v396 = vunpack.c.l.b16 %v375
    %v397 = vunpack.c.h.b16 %v375
    %v398 = vunpack.c.l.b16 %v376
    %v399 = vunpack.c.h.b16 %v376
    %v400 = vunpack.c.l.b16 %v377
    %v401 = vunpack.c.h.b16 %v377
    %v402 = vpack.c.b16 %v386, %v386
    %v403 = vpack.c.b16 %v387, %v387
    %v404 = vpack.c.b16 %v388, %v388
    %v405 = vpack.c.b16 %v389, %v389
    %v406 = vpack.c.b16 %v390, %v390
    %v407 = vpack.c.b16 %v391, %v391
    %v408 = vpack.c.b16 %v392, %v392
    %v409 = vpack.c.b16 %v393, %v393
    %v410 = vpack.c.b16 %v394, %v394
    %v411 = vpack.c.b16 %v395, %v395
    %v412 = vpack.c.b16 %v396, %v396
    %v413 = vpack.c.b16 %v397, %v397
    %v414 = vpack.c.b16 %v398, %v398
    %v415 = vpack.c.b16 %v399, %v399
    %v416 = vpack.c.b16 %v400, %v400
    %v417 = vpack.c.b16 %v401, %v401
    %434 = vst [vmem:[#allocation2] sm:$0xf] %v402
    %435 = vst [vmem:[#allocation2 + $0x4] sm:$0xf] %v403
    %436 = vst [vmem:[#allocation2 + $0x8] sm:$0xf] %v404
    %437 = vst [vmem:[#allocation2 + $0xc] sm:$0xf] %v405
    %438 = vst [vmem:[#allocation2 + $0x10] sm:$0xf] %v406
    %439 = vst [vmem:[#allocation2 + $0x14] sm:$0xf] %v407
    %440 = vst [vmem:[#allocation2 + $0x18] sm:$0xf] %v408
    %441 = vst [vmem:[#allocation2 + $0x1c] sm:$0xf] %v409
    %442 = vst [vmem:[#allocation2 + $0x20] sm:$0xf] %v410
    %443 = vst [vmem:[#allocation2 + $0x24] sm:$0xf] %v411
    %444 = vst [vmem:[#allocation2 + $0x28] sm:$0xf] %v412
    %445 = vst [vmem:[#allocation2 + $0x2c] sm:$0xf] %v413
    %446 = vst [vmem:[#allocation2 + $0x30] sm:$0xf] %v414
    %447 = vst [vmem:[#allocation2 + $0x34] sm:$0xf] %v415
    %448 = vst [vmem:[#allocation2 + $0x38] sm:$0xf] %v416
    %449 = vst [vmem:[#allocation2 + $0x3c] sm:$0xf] %v417
    // Predicated region
    $region18: #{tpu_custom_call.1} parent=1 // pred_check
      _
    $region19: #{tpu_custom_call.1} parent=1 // pred_check_branch
      %451 = sbr.rel (0) target = $region21
    $region20: #{tpu_custom_call.1} parent=1 // pred_region
      %s453 = ssub.s32 1024, 1024
      %454 = vsyncadd [#allocation3], %s453
      %s455 = sshll.u32 [#allocation2], 4
      %s456 = int_to_ptr.vmem [resolvable:$true] %s455
      %461 = dma.vmem_to_hbm [thread:$0]  %s456, 1024, %s4, [#allocation3], 64, 64, 4
    $region21: #{tpu_custom_call.1} parent=1 // pred_fallthru
      _
    // Predicated region
    $region22: #{tpu_custom_call.1} parent=1 // pred_check
      _
    $region23: #{tpu_custom_call.1} parent=1 // pred_check_branch
      %463 = sbr.rel (0) target = $region25
    $region24: #{tpu_custom_call.1} parent=1 // pred_region
      _
    $region25: #{tpu_custom_call.1} parent=1 // pred_fallthru
      _
    // Predicated region
    $region26: #{tpu_custom_call.1} parent=1 // pred_check
      _
    $region27: #{tpu_custom_call.1} parent=1 // pred_check_branch
      %465 = sbr.rel (0) target = $region29
    $region28: #{tpu_custom_call.1} parent=1 // pred_region
      _
    $region29: #{tpu_custom_call.1} parent=1 // pred_fallthru
      _
    // Predicated region
    $region30: #{tpu_custom_call.1} parent=1 // pred_check
      _
    $region31: #{tpu_custom_call.1} parent=1 // pred_check_branch
      %467 = sbr.rel (0) target = $region33
    $region32: #{tpu_custom_call.1} parent=1 // pred_region
      %468 = dma.done [#allocation3], 1024
    $region33: #{tpu_custom_call.1} parent=1 // pred_fallthru
      _
    // Predicated region
    $region34: #{tpu_custom_call.1} parent=1 // pred_check
      _
    $region35: #{tpu_custom_call.1} parent=1 // pred_check_branch
      %470 = sbr.rel (0) target = $region37
    $region36: #{tpu_custom_call.1} parent=1 // pred_region
      _
    $region37: #{tpu_custom_call.1} parent=1 // pred_fallthru
      _
    // Predicated region
    $region38: #{tpu_custom_call.1} parent=1 // pred_check
      _
    $region39: #{tpu_custom_call.1} parent=1 // pred_check_branch
      %472 = sbr.rel (0) target = $region41
    $region40: #{tpu_custom_call.1} parent=1 // pred_region
      _
    $region41: #{tpu_custom_call.1} parent=1 // pred_fallthru
      _
    %473 = vsyncpa [#allocation3], 1

</llo_original>
